<compile_context>
chip_gen: v7x
topology: tpu7x:2x2x1
jax: 0.10.0
libtpu: 0.0.40
codegen_flags: <defaults>
</compile_context>

<pallas_src>
import functools

import jax
import jax.numpy as jnp
from jax.experimental import pallas as pl
from jax.experimental.pallas import tpu as pltpu

NUM_LABELS = 2
VOCAB_SIZE = 32   # synthetic vocab size (original module had an empty word_to_id dict)
BATCH = 4


def bow_kernel(b_ref, x_ref, w_ref, o_ref, *, num_labels):
    # x: [bm, vocab] f32, vocab on the lane axis.
    x = x_ref[...]

    # logits[:, l] = sum_v x[:, v] * W[l, v] + b[l]   (VPU multiply + lane
    # reduce; bias added as an SMEM scalar; W stays in PyTorch [L, V] layout).
    cols = []
    for l in range(num_labels):
        wl = w_ref[l:l + 1, :]                                      # [1, vocab]
        col = jnp.sum(x * wl, axis=-1, keepdims=True) + b_ref[l]    # [bm, 1]
        cols.append(col)

    # Numerically stable log_softmax over the tiny label axis, done pairwise
    # on [bm, 1] columns (VALU/EUP only; no padded-vreg XLU reduce).
    m = cols[0]
    for c in cols[1:]:
        m = jnp.maximum(m, c)
    s = jnp.exp(cols[0] - m)
    for c in cols[1:]:
        s = s + jnp.exp(c - m)
    lse = jnp.log(s)

    for l, c in enumerate(cols):
        o_ref[:, l:l + 1] = (c - m - lse).astype(o_ref.dtype)


def bow_classifier(x, w, b, *, batch_tile=512):
    batch, vocab = x.shape
    num_labels = w.shape[0]
    # Batch tile: either the whole batch (single step) or a multiple-of-8
    # sublane-aligned tile for the pipelined multi-step case.
    if batch <= batch_tile:
        bm = batch
    else:
        bm = max(8, (batch_tile // 8) * 8)
    grid = (pl.cdiv(batch, bm),)

    kernel = functools.partial(bow_kernel, num_labels=num_labels)
    return pl.pallas_call(
        kernel,
        out_shape=jax.ShapeDtypeStruct((batch, num_labels), jnp.float32),
        grid=grid,
        in_specs=[
            # Bias: num_labels f32 scalars in SMEM.
            pl.BlockSpec(memory_space=pltpu.SMEM),
            # x: batch tiled, vocab resident on lanes.
            pl.BlockSpec((bm, vocab), lambda i: (i, 0)),
            # W: full [num_labels, vocab] block resident every step.
            pl.BlockSpec((num_labels, vocab), lambda i: (0, 0)),
        ],
        out_specs=pl.BlockSpec((bm, num_labels), lambda i: (i, 0)),
        compiler_params=pltpu.CompilerParams(
            dimension_semantics=("parallel",),  # batch tiles independent -> megacore / 2 TCs
        ),
    )(b, x, w)


if __name__ == "__main__":
    key = jax.random.PRNGKey(0)
    kx, kw, kb = jax.random.split(key, 3)

    # Deterministic synthetic parameters (nn.Linear(VOCAB_SIZE, NUM_LABELS)).
    bound = 1.0 / (VOCAB_SIZE ** 0.5)
    w = jax.random.uniform(
        kw, (NUM_LABELS, VOCAB_SIZE), jnp.float32, minval=-bound, maxval=bound
    )
    b = jax.random.uniform(
        kb, (NUM_LABELS,), jnp.float32, minval=-bound, maxval=bound
    )

    # Bag-of-words style input (nonnegative counts), batch of 4.
    x = jax.random.uniform(
        kx, (BATCH, VOCAB_SIZE), jnp.float32, minval=0.0, maxval=3.0
    )

    out = bow_classifier(x, w, b)
    out = jax.block_until_ready(out)

    # Reference check in plain JAX.
    ref = jax.nn.log_softmax(x @ w.T + b, axis=1)
    assert out.shape == (BATCH, NUM_LABELS)
    assert jnp.allclose(out, ref, atol=1e-5, rtol=1e-5)

    print("KERNEL_OK")
</pallas_src>

<mosaic_0001>
module attributes {stable_mosaic.version = 11 : i64} {
  func.func @bow_kernel(%arg0: i32, %arg1: memref<2xf32, #tpu.memory_space<smem>>, %arg2: memref<4x32xf32, #tpu.memory_space<vmem>>, %arg3: memref<2x32xf32, #tpu.memory_space<vmem>>, %arg4: memref<4x2xf32, #tpu.memory_space<vmem>>) attributes {dimension_semantics = [#tpu.dimension_semantics<parallel>], iteration_bounds = array<i64: 1>, scalar_prefetch = 0 : i64, scratch_operands = 0 : i64, tpu.core_type = #tpu.core_type<tc>, window_params = [{transform_indices = @transform_0, window_bounds = array<i64: 2>}, {transform_indices = @transform_1, window_bounds = array<i64: 4, 32>}, {pipeline_mode = #tpu.pipeline_mode<synchronous>, transform_indices = @transform_2, window_bounds = array<i64: 2, 32>}, {transform_indices = @transform_3, window_bounds = array<i64: 4, 2>}]} {
    %c0 = arith.constant 0 : index
    %c0_0 = arith.constant 0 : index
    %0 = vector.load %arg2[%c0, %c0_0] : memref<4x32xf32, #tpu.memory_space<vmem>>, vector<4x32xf32>
    %c0_1 = arith.constant 0 : index
    %c0_2 = arith.constant 0 : index
    %1 = vector.load %arg3[%c0_1, %c0_2] : memref<2x32xf32, #tpu.memory_space<vmem>>, vector<1x32xf32>
    %2 = vector.broadcast %1 : vector<1x32xf32> to vector<4x32xf32>
    %3 = arith.mulf %0, %2 : vector<4x32xf32>
    %cst = arith.constant dense<0.000000e+00> : vector<4xf32>
    %4 = vector.multi_reduction <add>, %3, %cst [1] : vector<4x32xf32> to vector<4xf32>
    %5 = vector.shape_cast %4 : vector<4xf32> to vector<4x1xf32>
    %c0_3 = arith.constant 0 : index
    %6 = memref.load %arg1[%c0_3] : memref<2xf32, #tpu.memory_space<smem>>
    %7 = vector.broadcast %6 : f32 to vector<4x1xf32>
    %8 = arith.addf %5, %7 : vector<4x1xf32>
    %c1 = arith.constant 1 : index
    %c0_4 = arith.constant 0 : index
    %9 = vector.load %arg3[%c1, %c0_4] : memref<2x32xf32, #tpu.memory_space<vmem>>, vector<1x32xf32>
    %10 = vector.broadcast %9 : vector<1x32xf32> to vector<4x32xf32>
    %11 = arith.mulf %0, %10 : vector<4x32xf32>
    %cst_5 = arith.constant dense<0.000000e+00> : vector<4xf32>
    %12 = vector.multi_reduction <add>, %11, %cst_5 [1] : vector<4x32xf32> to vector<4xf32>
    %13 = vector.shape_cast %12 : vector<4xf32> to vector<4x1xf32>
    %c1_6 = arith.constant 1 : index
    %14 = memref.load %arg1[%c1_6] : memref<2xf32, #tpu.memory_space<smem>>
    %15 = vector.broadcast %14 : f32 to vector<4x1xf32>
    %16 = arith.addf %13, %15 : vector<4x1xf32>
    %17 = arith.maximumf %8, %16 : vector<4x1xf32>
    %18 = arith.subf %8, %17 : vector<4x1xf32>
    %19 = math.exp %18 : vector<4x1xf32>
    %20 = arith.subf %16, %17 : vector<4x1xf32>
    %21 = math.exp %20 : vector<4x1xf32>
    %22 = arith.addf %19, %21 : vector<4x1xf32>
    %23 = math.log %22 : vector<4x1xf32>
    %24 = arith.subf %8, %17 : vector<4x1xf32>
    %25 = arith.subf %24, %23 : vector<4x1xf32>
    %c0_7 = arith.constant 0 : index
    %c0_8 = arith.constant 0 : index
    %26 = vector.load %arg4[%c0_7, %c0_8] : memref<4x2xf32, #tpu.memory_space<vmem>>, vector<4x1xf32>
    tpu.vector_store %arg4[%c0_7, %c0_8], %25 {strides = array<i32>} : memref<4x2xf32, #tpu.memory_space<vmem>>, vector<4x1xf32>,
    %27 = arith.subf %16, %17 : vector<4x1xf32>
    %28 = arith.subf %27, %23 : vector<4x1xf32>
    %c0_9 = arith.constant 0 : index
    %c1_10 = arith.constant 1 : index
    %29 = vector.load %arg4[%c0_9, %c1_10] : memref<4x2xf32, #tpu.memory_space<vmem>>, vector<4x1xf32>
    tpu.vector_store %arg4[%c0_9, %c1_10], %28 {strides = array<i32>} : memref<4x2xf32, #tpu.memory_space<vmem>>, vector<4x1xf32>,
    return
  }
  func.func @transform_0(%arg0: i32) -> i32 {
    %c0_i32 = arith.constant 0 : i32
    %c0_i32_0 = arith.constant 0 : i32
    return %c0_i32 : i32
  }
  func.func @transform_1(%arg0: i32) -> (i32, i32) {
    %c0_i32 = arith.constant 0 : i32
    %c0_i32_0 = arith.constant 0 : i32
    return %arg0, %c0_i32 : i32, i32
  }
  func.func @transform_2(%arg0: i32) -> (i32, i32) {
    %c0_i32 = arith.constant 0 : i32
    %c0_i32_0 = arith.constant 0 : i32
    %c0_i32_1 = arith.constant 0 : i32
    return %c0_i32, %c0_i32_0 : i32, i32
  }
  func.func @transform_3(%arg0: i32) -> (i32, i32) {
    %c0_i32 = arith.constant 0 : i32
    %c0_i32_0 = arith.constant 0 : i32
    return %arg0, %c0_i32 : i32, i32
  }
}

</mosaic_0001>

<llo_original>
// kernel: tpu_custom_call.1
$region0: #{tpu_custom_call.1}
  #allocation0 [shape = 'u32[]', space=smem, size = 0x4, offset = 0x4, fixed_abs, tag = 'smem constant byte address 0x4 - core index']
  #allocation1 [shape = 'u32[144,128]{1,0:T(1,128)}', space=vmem, size = 0x12000, scoped, tag = 'internal scratch']
  %s0 = inlined_call_operand.hbm [shape: f32[2], index: 0, kind: input, shape index: {}]
  %s1 = inlined_call_operand.hbm [shape: f32[4,32], index: 1, kind: input, shape index: {}]
  %s2 = inlined_call_operand.vmem [shape: f32[2,32], index: 2, kind: input, shape index: {}]
  %s3 = inlined_call_operand.vmem [shape: f32[4,2], index: 3, kind: output, shape index: {}]
  %s4 = sld [smem:[#allocation0]]
  $region30: #{tpu_custom_call.1} parent=0
    _
  %s6 = ssub.s32 1, %s4
  %s7 = scalar_select 0, %s6, %s4
  $region1: #{tpu_custom_call.1} parent=0
    #allocation2 [shape = 'u8[512]{0}', space=smem, size = 0x200, scoped, tag = 'input window, operand 0, single buffered']
    #allocation3 [shape = 's32[1]{0}', space=sflag, size = 0x4, scoped, tag = 'scoped memory for tpu_custom_call.1']
    #allocation4 [shape = 's32[1]{0}', space=sflag, size = 0x4, scoped, tag = 'scoped memory for tpu_custom_call.1']
    #allocation5 [shape = 'u8[2048]{0}', space=vmem, size = 0x800, scoped, tag = 'input window, operand 1, single buffered']
    %8 = vsyncpa [#allocation4], 0
    %9 = vsyncpa [#allocation3], 0
    // Predicated region
    $region2: #{tpu_custom_call.1} parent=1 // pred_check
      _
    $region3: #{tpu_custom_call.1} parent=1 // pred_check_branch
      %11 = sbr.rel (0) target = $region5
    $region4: #{tpu_custom_call.1} parent=1 // pred_region
      %s13 = ssub.s32 16, 16
      %14 = vsyncadd [#allocation4], %s13
      %17 = dma.hbm_to_smem %s0, 16, [#allocation2], [#allocation4]
    $region5: #{tpu_custom_call.1} parent=1 // pred_fallthru
      _
    // Predicated region
    $region6: #{tpu_custom_call.1} parent=1 // pred_check
      _
    $region7: #{tpu_custom_call.1} parent=1 // pred_check_branch
      %19 = sbr.rel (0) target = $region9
    $region8: #{tpu_custom_call.1} parent=1 // pred_region
      %s21 = ssub.s32 64, 64
      %22 = vsyncadd [#allocation3], %s21
      %s24 = sshll.u32 [#allocation5], 4
      %s25 = int_to_ptr.vmem [resolvable:$true] %s24
      %27 = dma.hbm_to_vmem [thread:$0]  %s1, 64, %s25, [#allocation3]
    $region9: #{tpu_custom_call.1} parent=1 // pred_fallthru
      _
    // Predicated region
    $region10: #{tpu_custom_call.1} parent=1 // pred_check
      _
    $region11: #{tpu_custom_call.1} parent=1 // pred_check_branch
      %29 = sbr.rel (0) target = $region13
    $region12: #{tpu_custom_call.1} parent=1 // pred_region
      _
    $region13: #{tpu_custom_call.1} parent=1 // pred_fallthru
      _
    // Predicated region
    $region14: #{tpu_custom_call.1} parent=1 // pred_check
      _
    $region15: #{tpu_custom_call.1} parent=1 // pred_check_branch
      %31 = sbr.rel (0) target = $region17
    $region16: #{tpu_custom_call.1} parent=1 // pred_region
      %32 = dma.done [#allocation4], 16
    $region17: #{tpu_custom_call.1} parent=1 // pred_fallthru
      _
    // Predicated region
    $region18: #{tpu_custom_call.1} parent=1 // pred_check
      _
    $region19: #{tpu_custom_call.1} parent=1 // pred_check_branch
      %34 = sbr.rel (0) target = $region21
    $region20: #{tpu_custom_call.1} parent=1 // pred_region
      %35 = dma.done [#allocation3], 64
    $region21: #{tpu_custom_call.1} parent=1 // pred_fallthru
      _
    %36 = sfence
    %v37 = vld [vmem:[#allocation5] sm:$0xf]
    %v38 = vld [vmem:[%s2] sm:$0x1]
    %v39 = vlaneseq
    %v40 = vshrl.u32 %v39, 7
    %v41 = vsub.s32 0, %v40
    %v42 = vrot.slane %v38, %v41
    %v43 = vmul.f32 %v37, %v42
    %vm44 = vcmask 257024
    %v45 = vsel %vm44, %v43, 0.0
    %46 = vadd.xlane.f32.xlu0 %v45
    %v47 = vpop.xlane.xlu0 %46
    %s48 = sld [smem:[#allocation2]]
    %v49 = vstv %s48
    %v50 = vadd.f32 %v47, %v49
    %v51 = vld [vmem:[%s2 + $0x1] sm:$0x1]
    %v52 = vlaneseq
    %v53 = vshrl.u32 %v52, 7
    %v54 = vsub.s32 0, %v53
    %v55 = vrot.slane %v51, %v54
    %v56 = vmul.f32 %v37, %v55
    %v57 = vsel %vm44, %v56, 0.0
    %58 = vadd.xlane.f32.xlu0 %v57
    %v59 = vpop.xlane.xlu0 %58
    %s60 = sld [smem:[#allocation2 + $0x1]]
    %v61 = vstv %s60
    %v62 = vadd.f32 %v59, %v61
    %v63 = vmax.f32 %v50, %v62
    %v64 = vsub.f32 %v50, %v63
    %v65 = vmul.f32 %v64, 1.442695
    %v66 = vpow.pop %v65
    %v67 = vsub.f32 %v62, %v63
    %v68 = vmul.f32 %v67, 1.442695
    %v69 = vpow.pop %v68
    %v70 = vadd.f32 %v66, %v69
    %v71 = vlog2.pop %v70
    %v72 = vmul.f32 %v71, 0.6931472
    %v73 = vsub.f32 %v64, %v72
    %vm74 = vcmask 3072
    %75 = vst.msk [vmem:[%s3] sm:$0xf] %vm74, %v73
    %v76 = vsub.f32 %v67, %v72
    %vm77 = vcmask 11272
    %78 = vst.msk [vmem:[%s3] sm:$0xf] %vm77, %v76
    // Predicated region
    $region22: #{tpu_custom_call.1} parent=1 // pred_check
      _
    $region23: #{tpu_custom_call.1} parent=1 // pred_check_branch
      %80 = sbr.rel (0) target = $region25
    $region24: #{tpu_custom_call.1} parent=1 // pred_region
      _
    $region25: #{tpu_custom_call.1} parent=1 // pred_fallthru
      _
    // Predicated region
    $region26: #{tpu_custom_call.1} parent=1 // pred_check
      _
    $region27: #{tpu_custom_call.1} parent=1 // pred_check_branch
      %82 = sbr.rel (0) target = $region29
    $region28: #{tpu_custom_call.1} parent=1 // pred_region
      _
    $region29: #{tpu_custom_call.1} parent=1 // pred_fallthru
      _
    %83 = vsyncpa [#allocation3], 1
    %84 = vsyncpa [#allocation4], 1

</llo_original>
